<compile_context>
chip_gen: v6e
topology: v6e:2x2x1
jax: 0.10.0
libtpu: 0.0.40
codegen_flags: <defaults>
</compile_context>

<pallas_src>
import jax
import jax.numpy as jnp
from jax import lax
from jax.experimental import pallas as pl
from jax.experimental.pallas import tpu as pltpu

HIDDEN = 8                      # n_nodes_per_layer in the PyTorch module
LANE = 128                      # TPU lane width
MAX_TILE_B = 32768              # lane cap per batch tile
VMEM_TILE_BUDGET = 8 << 20      # ~8 MiB budget for x (double-buffered) + live hiddens


def _round_up(n, m):
    return ((n + m - 1) // m) * m


def _choose_tile_b(batch, in_feats):
    """Pick the batch-tile width (multiple of 128) from a VMEM budget."""
    b_pad128 = _round_up(batch, LANE)
    # Bytes per batch lane held in VMEM: 2x double-buffered x columns (in_feats f32)
    # plus a handful of live (HIDDEN, tile_b) f32 intermediates / output buffers.
    bytes_per_lane = 4 * (2 * in_feats + 8 * HIDDEN)
    cap = (VMEM_TILE_BUDGET // bytes_per_lane) // LANE * LANE
    cap = max(LANE, min(MAX_TILE_B, cap))
    tile_b = min(cap, b_pad128)
    # v7x megacore: a large batch collapsed into one tile leaves a TensorCore idle.
    if tile_b == b_pad128 and b_pad128 >= 2 * 1024:
        tile_b = _round_up(pl.cdiv(b_pad128, 2), LANE)
    return tile_b


def _ffnn_kernel(x_ref, w1_ref, wr_ref, b_ref, o_ref):
    """Fused 5-layer MLP on one batch tile.

    x_ref : (tile_b, in_feats)    batch-major input tile (as given by the caller)
    w1_ref: (HIDDEN, in_feats)    layer-1 weight (out, in)
    wr_ref: (4, HIDDEN, HIDDEN)   layers 2..5 weights; slot 3 holds w5 in row 0
    b_ref : (5, HIDDEN, 1)        biases, zero-padded; broadcast along lanes
    o_ref : (1, tile_b)           regression output (lane-dense store)
    """
    # Layer 1: contract feature axes (W1 @ x^T) -> (HIDDEN, tile_b): hidden on
    # sublanes, batch on lanes. The transpose is absorbed by the MXU/XLU in VMEM.
    h = lax.dot_general(
        w1_ref[...], x_ref[...],
        dimension_numbers=(((1,), (1,)), ((), ())),
        preferred_element_type=jnp.float32)
    h = jnp.tanh(h + b_ref[0])

    # Layers 2..4: h = tanh(W @ h + b), shapes (8, tile_b)
    h = jnp.tanh(jnp.dot(wr_ref[0], h, preferred_element_type=jnp.float32) + b_ref[1])
    h = jnp.tanh(jnp.dot(wr_ref[1], h, preferred_element_type=jnp.float32) + b_ref[2])
    h = jnp.tanh(jnp.dot(wr_ref[2], h, preferred_element_type=jnp.float32) + b_ref[3])

    # Layer 5: w5 lives in row 0 of wr_ref[3] (rows 1..7 are zero).
    out_full = jnp.dot(wr_ref[3], h, preferred_element_type=jnp.float32)   # (8, tile_b)
    o_ref[...] = (out_full[:1, :] + b_ref[4][:1]).astype(o_ref.dtype)      # (1, tile_b)


def pack_params(params):
    """One-time packing of the 5 weights / 5 biases into 3 small resident operands.
    Call once per parameter update, NOT per forward pass."""
    w1p = jnp.asarray(params["w1"], jnp.float32)                  # (8, input_dim)
    wr = jnp.zeros((4, HIDDEN, HIDDEN), jnp.float32)
    wr = wr.at[0].set(params["w2"]).at[1].set(params["w3"]).at[2].set(params["w4"])
    wr = wr.at[3, :1, :].set(params["w5"])                        # (1, 8) into row 0
    bp = jnp.zeros((5, HIDDEN, 1), jnp.float32)
    for i in range(1, 6):
        b = jnp.asarray(params[f"b{i}"], jnp.float32)
        bp = bp.at[i - 1, : b.shape[0], 0].set(b)
    return w1p, wr, bp


@jax.jit
def _ffnn_forward(x, w1p, wr, bp):
    batch, in_feats = x.shape
    tile_b = _choose_tile_b(batch, in_feats)
    b_pad = _round_up(batch, tile_b)

    x = x.astype(jnp.float32)
    if b_pad != batch:
        # Only a (cheap) batch pad when needed; no transpose, no feature pad.
        x = jnp.pad(x, ((0, b_pad - batch), (0, 0)))

    out_t = pl.pallas_call(
        _ffnn_kernel,
        out_shape=jax.ShapeDtypeStruct((1, b_pad), jnp.float32),
        grid_spec=pltpu.PrefetchScalarGridSpec(
            num_scalar_prefetch=0,
            grid=(b_pad // tile_b,),
            in_specs=[
                # moving batch-major x tile
                pl.BlockSpec((tile_b, in_feats), lambda i: (i, 0)),
                # resident packed parameters (constant block index -> fetched once)
                pl.BlockSpec((HIDDEN, in_feats), lambda i: (0, 0)),
                pl.BlockSpec((4, HIDDEN, HIDDEN), lambda i: (0, 0, 0)),
                pl.BlockSpec((5, HIDDEN, 1), lambda i: (0, 0, 0)),
            ],
            out_specs=pl.BlockSpec((1, tile_b), lambda i: (0, i)),
        ),
        compiler_params=pltpu.CompilerParams(
            dimension_semantics=("parallel",),
            vmem_limit_bytes=48 * 1024 * 1024,
        ),
    )(x, w1p, wr, bp)

    # Back to PyTorch convention: (batch, 1)
    return out_t[0, :batch][:, None]


def ffnn_regression_b(x, packed_params):
    """x: (batch, input_dim) f32 batch-major; packed_params = pack_params(params).
    Returns (batch, 1) f32, identical semantics to FFNNRegressionB.forward."""
    return _ffnn_forward(x, *packed_params)


def init_params(key, input_dim):
    """PyTorch nn.Linear default init: U(-1/sqrt(fan_in), 1/sqrt(fan_in));
    weights stored (out_features, in_features) like torch."""
    dims = [(input_dim, HIDDEN), (HIDDEN, HIDDEN), (HIDDEN, HIDDEN),
            (HIDDEN, HIDDEN), (HIDDEN, 1)]
    params = {}
    for i, (fan_in, fan_out) in enumerate(dims, start=1):
        key, kw, kb = jax.random.split(key, 3)
        bound = 1.0 / float(fan_in) ** 0.5
        params[f"w{i}"] = jax.random.uniform(
            kw, (fan_out, fan_in), jnp.float32, -bound, bound)
        params[f"b{i}"] = jax.random.uniform(
            kb, (fan_out,), jnp.float32, -bound, bound)
    return params


def _reference(x, params):
    h = x
    for i in range(1, 5):
        h = jnp.tanh(h @ params[f"w{i}"].T + params[f"b{i}"])
    return h @ params["w5"].T + params["b5"]


if __name__ == "__main__":
    key = jax.random.PRNGKey(0)
    k_params, k_x1, k_x2, k_x3 = jax.random.split(key, 4)

    input_dim = 16
    params = init_params(k_params, input_dim)
    packed = pack_params(params)   # hoisted out of the per-call path

    # Small batch (single padded 128-lane tile).
    x_small = jax.random.normal(k_x1, (8, input_dim), jnp.float32)
    out_small = jax.block_until_ready(ffnn_regression_b(x_small, packed))
    ref_small = _reference(x_small, params)
    assert out_small.shape == (8, 1), out_small.shape
    assert jnp.allclose(out_small, ref_small, atol=1e-5, rtol=1e-5), \
        "small-batch mismatch vs JAX reference"

    # Mid batch: non-multiple of 128 -> adaptive single tile with minimal padding.
    x_mid = jax.random.normal(k_x2, (600, input_dim), jnp.float32)
    out_mid = jax.block_until_ready(ffnn_regression_b(x_mid, packed))
    ref_mid = _reference(x_mid, params)
    assert out_mid.shape == (600, 1), out_mid.shape
    assert jnp.allclose(out_mid, ref_mid, atol=1e-5, rtol=1e-5), \
        "mid-batch mismatch vs JAX reference"

    # Larger batch: exercises the 2-tile split path (v7x megacore) and grid > 1.
    x_big = jax.random.normal(k_x3, (2304, input_dim), jnp.float32)
    out_big = jax.block_until_ready(ffnn_regression_b(x_big, packed))
    ref_big = _reference(x_big, params)
    assert out_big.shape == (2304, 1), out_big.shape
    assert jnp.allclose(out_big, ref_big, atol=1e-5, rtol=1e-5), \
        "large-batch mismatch vs JAX reference"

    print("KERNEL_OK")
</pallas_src>

<mosaic_0001>
module attributes {stable_mosaic.version = 11 : i64} {
  func.func @_ffnn_kernel(%arg0: i32, %arg1: memref<128x16xf32, #tpu.memory_space<vmem>>, %arg2: memref<8x16xf32, #tpu.memory_space<vmem>>, %arg3: memref<4x8x8xf32, #tpu.memory_space<vmem>>, %arg4: memref<5x8x1xf32, #tpu.memory_space<vmem>>, %arg5: memref<1x128xf32, #tpu.memory_space<vmem>>) attributes {dimension_semantics = [#tpu.dimension_semantics<parallel>], iteration_bounds = array<i64: 1>, scalar_prefetch = 0 : i64, scratch_operands = 0 : i64, tpu.core_type = #tpu.core_type<tc>, window_params = [{transform_indices = @transform_0, window_bounds = array<i64: 128, 16>}, {pipeline_mode = #tpu.pipeline_mode<synchronous>, transform_indices = @transform_1, window_bounds = array<i64: 8, 16>}, {pipeline_mode = #tpu.pipeline_mode<synchronous>, transform_indices = @transform_2, window_bounds = array<i64: 4, 8, 8>}, {pipeline_mode = #tpu.pipeline_mode<synchronous>, transform_indices = @transform_3, window_bounds = array<i64: 5, 8, 1>}, {transform_indices = @transform_4, window_bounds = array<i64: 1, 128>}]} {
    %c0 = arith.constant 0 : index
    %c0_0 = arith.constant 0 : index
    %0 = vector.load %arg2[%c0, %c0_0] : memref<8x16xf32, #tpu.memory_space<vmem>>, vector<8x16xf32>
    %c0_1 = arith.constant 0 : index
    %c0_2 = arith.constant 0 : index
    %1 = vector.load %arg1[%c0_1, %c0_2] : memref<128x16xf32, #tpu.memory_space<vmem>>, vector<128x16xf32>
    %cst = arith.constant dense<0.000000e+00> : vector<8x128xf32>
    %2 = tpu.matmul %0, %1, %cst {dimension_numbers = #tpu.dot_dimension_numbers<[1], [1], [0], [0], [0, 0, 1, 0], [], []>} : vector<8x16xf32>, vector<128x16xf32>, vector<8x128xf32> -> vector<8x128xf32>
    %c0_3 = arith.constant 0 : index
    %c0_4 = arith.constant 0 : index
    %c0_5 = arith.constant 0 : index
    %3 = vector.load %arg4[%c0_3, %c0_4, %c0_5] : memref<5x8x1xf32, #tpu.memory_space<vmem>>, vector<1x8x1xf32>
    %4 = vector.shape_cast %3 : vector<1x8x1xf32> to vector<8x1xf32>
    %5 = vector.broadcast %4 : vector<8x1xf32> to vector<8x128xf32>
    %6 = arith.addf %2, %5 : vector<8x128xf32>
    %7 = math.tanh %6 : vector<8x128xf32>
    %c0_6 = arith.constant 0 : index
    %c0_7 = arith.constant 0 : index
    %c0_8 = arith.constant 0 : index
    %8 = vector.load %arg3[%c0_6, %c0_7, %c0_8] : memref<4x8x8xf32, #tpu.memory_space<vmem>>, vector<1x8x8xf32>
    %9 = vector.shape_cast %8 : vector<1x8x8xf32> to vector<8x8xf32>
    %cst_9 = arith.constant dense<0.000000e+00> : vector<8x128xf32>
    %10 = tpu.matmul %9, %7, %cst_9 {dimension_numbers = #tpu.dot_dimension_numbers<[1], [0], [0], [1], [0, 0, 1, 1], [], []>} : vector<8x8xf32>, vector<8x128xf32>, vector<8x128xf32> -> vector<8x128xf32>
    %c1 = arith.constant 1 : index
    %c0_10 = arith.constant 0 : index
    %c0_11 = arith.constant 0 : index
    %11 = vector.load %arg4[%c1, %c0_10, %c0_11] : memref<5x8x1xf32, #tpu.memory_space<vmem>>, vector<1x8x1xf32>
    %12 = vector.shape_cast %11 : vector<1x8x1xf32> to vector<8x1xf32>
    %13 = vector.broadcast %12 : vector<8x1xf32> to vector<8x128xf32>
    %14 = arith.addf %10, %13 : vector<8x128xf32>
    %15 = math.tanh %14 : vector<8x128xf32>
    %c1_12 = arith.constant 1 : index
    %c0_13 = arith.constant 0 : index
    %c0_14 = arith.constant 0 : index
    %16 = vector.load %arg3[%c1_12, %c0_13, %c0_14] : memref<4x8x8xf32, #tpu.memory_space<vmem>>, vector<1x8x8xf32>
    %17 = vector.shape_cast %16 : vector<1x8x8xf32> to vector<8x8xf32>
    %cst_15 = arith.constant dense<0.000000e+00> : vector<8x128xf32>
    %18 = tpu.matmul %17, %15, %cst_15 {dimension_numbers = #tpu.dot_dimension_numbers<[1], [0], [0], [1], [0, 0, 1, 1], [], []>} : vector<8x8xf32>, vector<8x128xf32>, vector<8x128xf32> -> vector<8x128xf32>
    %c2 = arith.constant 2 : index
    %c0_16 = arith.constant 0 : index
    %c0_17 = arith.constant 0 : index
    %19 = vector.load %arg4[%c2, %c0_16, %c0_17] : memref<5x8x1xf32, #tpu.memory_space<vmem>>, vector<1x8x1xf32>
    %20 = vector.shape_cast %19 : vector<1x8x1xf32> to vector<8x1xf32>
    %21 = vector.broadcast %20 : vector<8x1xf32> to vector<8x128xf32>
    %22 = arith.addf %18, %21 : vector<8x128xf32>
    %23 = math.tanh %22 : vector<8x128xf32>
    %c2_18 = arith.constant 2 : index
    %c0_19 = arith.constant 0 : index
    %c0_20 = arith.constant 0 : index
    %24 = vector.load %arg3[%c2_18, %c0_19, %c0_20] : memref<4x8x8xf32, #tpu.memory_space<vmem>>, vector<1x8x8xf32>
    %25 = vector.shape_cast %24 : vector<1x8x8xf32> to vector<8x8xf32>
    %cst_21 = arith.constant dense<0.000000e+00> : vector<8x128xf32>
    %26 = tpu.matmul %25, %23, %cst_21 {dimension_numbers = #tpu.dot_dimension_numbers<[1], [0], [0], [1], [0, 0, 1, 1], [], []>} : vector<8x8xf32>, vector<8x128xf32>, vector<8x128xf32> -> vector<8x128xf32>
    %c3 = arith.constant 3 : index
    %c0_22 = arith.constant 0 : index
    %c0_23 = arith.constant 0 : index
    %27 = vector.load %arg4[%c3, %c0_22, %c0_23] : memref<5x8x1xf32, #tpu.memory_space<vmem>>, vector<1x8x1xf32>
    %28 = vector.shape_cast %27 : vector<1x8x1xf32> to vector<8x1xf32>
    %29 = vector.broadcast %28 : vector<8x1xf32> to vector<8x128xf32>
    %30 = arith.addf %26, %29 : vector<8x128xf32>
    %31 = math.tanh %30 : vector<8x128xf32>
    %c3_24 = arith.constant 3 : index
    %c0_25 = arith.constant 0 : index
    %c0_26 = arith.constant 0 : index
    %32 = vector.load %arg3[%c3_24, %c0_25, %c0_26] : memref<4x8x8xf32, #tpu.memory_space<vmem>>, vector<1x8x8xf32>
    %33 = vector.shape_cast %32 : vector<1x8x8xf32> to vector<8x8xf32>
    %cst_27 = arith.constant dense<0.000000e+00> : vector<8x128xf32>
    %34 = tpu.matmul %33, %31, %cst_27 {dimension_numbers = #tpu.dot_dimension_numbers<[1], [0], [0], [1], [0, 0, 1, 1], [], []>} : vector<8x8xf32>, vector<8x128xf32>, vector<8x128xf32> -> vector<8x128xf32>
    %35 = vector.extract_strided_slice %34 {offsets = [0, 0], sizes = [1, 128], strides = [1, 1]} : vector<8x128xf32> to vector<1x128xf32>
    %c4 = arith.constant 4 : index
    %c0_28 = arith.constant 0 : index
    %c0_29 = arith.constant 0 : index
    %36 = vector.load %arg4[%c4, %c0_28, %c0_29] : memref<5x8x1xf32, #tpu.memory_space<vmem>>, vector<1x8x1xf32>
    %37 = vector.shape_cast %36 : vector<1x8x1xf32> to vector<8x1xf32>
    %38 = vector.extract_strided_slice %37 {offsets = [0, 0], sizes = [1, 1], strides = [1, 1]} : vector<8x1xf32> to vector<1x1xf32>
    %39 = vector.broadcast %38 : vector<1x1xf32> to vector<1x128xf32>
    %40 = arith.addf %35, %39 : vector<1x128xf32>
    %c0_30 = arith.constant 0 : index
    %c0_31 = arith.constant 0 : index
    %41 = vector.load %arg5[%c0_30, %c0_31] : memref<1x128xf32, #tpu.memory_space<vmem>>, vector<1x128xf32>
    tpu.vector_store %arg5[%c0_30, %c0_31], %40 {strides = array<i32>} : memref<1x128xf32, #tpu.memory_space<vmem>>, vector<1x128xf32>,
    return
  }
  func.func @transform_0(%arg0: i32) -> (i32, i32) {
    %c0_i32 = arith.constant 0 : i32
    %c0_i32_0 = arith.constant 0 : i32
    return %arg0, %c0_i32 : i32, i32
  }
  func.func @transform_1(%arg0: i32) -> (i32, i32) {
    %c0_i32 = arith.constant 0 : i32
    %c0_i32_0 = arith.constant 0 : i32
    %c0_i32_1 = arith.constant 0 : i32
    return %c0_i32, %c0_i32_0 : i32, i32
  }
  func.func @transform_2(%arg0: i32) -> (i32, i32, i32) {
    %c0_i32 = arith.constant 0 : i32
    %c0_i32_0 = arith.constant 0 : i32
    %c0_i32_1 = arith.constant 0 : i32
    %c0_i32_2 = arith.constant 0 : i32
    return %c0_i32, %c0_i32_0, %c0_i32_1 : i32, i32, i32
  }
  func.func @transform_3(%arg0: i32) -> (i32, i32, i32) {
    %c0_i32 = arith.constant 0 : i32
    %c0_i32_0 = arith.constant 0 : i32
    %c0_i32_1 = arith.constant 0 : i32
    %c0_i32_2 = arith.constant 0 : i32
    return %c0_i32, %c0_i32_0, %c0_i32_1 : i32, i32, i32
  }
  func.func @transform_4(%arg0: i32) -> (i32, i32) {
    %c0_i32 = arith.constant 0 : i32
    %c0_i32_0 = arith.constant 0 : i32
    return %c0_i32, %arg0 : i32, i32
  }
}

</mosaic_0001>

<llo_original>
// kernel: _ffnn_forward.1
$region0: #{_ffnn_forward.1}
  #allocation0 [shape = 'u32[]', space=smem, size = 0x4, offset = 0x4, fixed_abs, tag = 'smem constant byte address 0x4 - core index']
  #allocation1 [shape = 'u32[144,128]{1,0:T(1,128)}', space=vmem, size = 0x12000, scoped, tag = 'internal scratch']
  %s0 = inlined_call_operand.vmem [shape: f32[128,16], index: 0, kind: input, shape index: {}]
  %s1 = inlined_call_operand.vmem [shape: f32[8,16], index: 1, kind: input, shape index: {}]
  %s2 = inlined_call_operand.vmem [shape: f32[4,8,8], index: 2, kind: input, shape index: {}]
  %s3 = inlined_call_operand.vmem [shape: f32[5,8,1], index: 3, kind: input, shape index: {}]
  %s4 = inlined_call_operand.vmem [shape: f32[1,128], index: 4, kind: output, shape index: {}]
  %s5 = sld [smem:[#allocation0]]
  $region26: #{_ffnn_forward.1} parent=0
    _
  %s7 = ssub.s32 1, %s5
  %s8 = scalar_select 0, %s7, %s5
  // Predicated region
  $region2: #{_ffnn_forward.1} parent=0 // pred_check
    _
  $region3: #{_ffnn_forward.1} parent=0 // pred_check_branch
    %10 = sbr.rel (0) target = $region5
  $region4: #{_ffnn_forward.1} parent=0 // pred_region
    _
  $region5: #{_ffnn_forward.1} parent=0 // pred_fallthru
    _
  // Predicated region
  $region6: #{_ffnn_forward.1} parent=0 // pred_check
    _
  $region7: #{_ffnn_forward.1} parent=0 // pred_check_branch
    %12 = sbr.rel (0) target = $region9
  $region8: #{_ffnn_forward.1} parent=0 // pred_region
    _
  $region9: #{_ffnn_forward.1} parent=0 // pred_fallthru
    _
  // Predicated region
  $region10: #{_ffnn_forward.1} parent=0 // pred_check
    _
  $region11: #{_ffnn_forward.1} parent=0 // pred_check_branch
    %14 = sbr.rel (0) target = $region13
  $region12: #{_ffnn_forward.1} parent=0 // pred_region
    _
  $region13: #{_ffnn_forward.1} parent=0 // pred_fallthru
    _
  // Predicated region
  $region14: #{_ffnn_forward.1} parent=0 // pred_check
    _
  $region15: #{_ffnn_forward.1} parent=0 // pred_check_branch
    %16 = sbr.rel (0) target = $region17
  $region16: #{_ffnn_forward.1} parent=0 // pred_region
    _
  $region17: #{_ffnn_forward.1} parent=0 // pred_fallthru
    _
  %v17 = vld [vmem:[%s1] sm:$0xff]
  %v18 = vld [vmem:[%s0] sm:$0xff]
  %v19 = vld [vmem:[%s0 + $0x8] sm:$0xff]
  %v20 = vld [vmem:[%s0 + $0x10] sm:$0xff]
  %v21 = vld [vmem:[%s0 + $0x18] sm:$0xff]
  %v22 = vld [vmem:[%s0 + $0x20] sm:$0xff]
  %v23 = vld [vmem:[%s0 + $0x28] sm:$0xff]
  %v24 = vld [vmem:[%s0 + $0x30] sm:$0xff]
  %v25 = vld [vmem:[%s0 + $0x38] sm:$0xff]
  %v26 = vld [vmem:[%s0 + $0x40] sm:$0xff]
  %v27 = vld [vmem:[%s0 + $0x48] sm:$0xff]
  %v28 = vld [vmem:[%s0 + $0x50] sm:$0xff]
  %v29 = vld [vmem:[%s0 + $0x58] sm:$0xff]
  %v30 = vld [vmem:[%s0 + $0x60] sm:$0xff]
  %v31 = vld [vmem:[%s0 + $0x68] sm:$0xff]
  %v32 = vld [vmem:[%s0 + $0x70] sm:$0xff]
  %v33 = vld [vmem:[%s0 + $0x78] sm:$0xff]
  %v34 = vld [vmem:[%s3] sm:$0xff]
  %36 = vset.pattern.permute.xlu0 0
  %37 = vperm.xlu0 %36, %v34
  %v38 = vpop.permute.xlu0 %37
  %vm40 = vcmask 130048
  %v42 = vsel %vm40, %v17, 0
  %v45 = vsel %vm40, %v18, 0
  %v48 = vsel %vm40, %v19, 0
  %v51 = vsel %vm40, %v20, 0
  %v54 = vsel %vm40, %v21, 0
  %v57 = vsel %vm40, %v22, 0
  %v60 = vsel %vm40, %v23, 0
  %v63 = vsel %vm40, %v24, 0
  %v66 = vsel %vm40, %v25, 0
  %v69 = vsel %vm40, %v26, 0
  %v72 = vsel %vm40, %v27, 0
  %v75 = vsel %vm40, %v28, 0
  %v78 = vsel %vm40, %v29, 0
  %v81 = vsel %vm40, %v30, 0
  %v84 = vsel %vm40, %v31, 0
  %v87 = vsel %vm40, %v32, 0
  %v90 = vsel %vm40, %v33, 0
  %92 = vmatprep.subr.mxu0 0.0
  %93 = vmatpush1.xpose.msra.mxu0 %v90
  %94 = vmatprep.subr.mxu0 0.0
  %95 = vmatpush1.xpose.msra.mxu0 %v87
  %96 = vmatprep.subr.mxu0 0.0
  %97 = vmatpush1.xpose.msra.mxu0 %v84
  %98 = vmatprep.subr.mxu0 0.0
  %99 = vmatpush1.xpose.msra.mxu0 %v81
  %100 = vmatprep.subr.mxu0 0.0
  %101 = vmatpush1.xpose.msra.mxu0 %v78
  %102 = vmatprep.subr.mxu0 0.0
  %103 = vmatpush1.xpose.msra.mxu0 %v75
  %104 = vmatprep.subr.mxu0 0.0
  %105 = vmatpush1.xpose.msra.mxu0 %v72
  %106 = vmatprep.subr.mxu0 0.0
  %107 = vmatpush1.xpose.msra.mxu0 %v69
  %108 = vmatprep.subr.mxu0 0.0
  %109 = vmatpush1.xpose.msra.mxu0 %v66
  %110 = vmatprep.subr.mxu0 0.0
  %111 = vmatpush1.xpose.msra.mxu0 %v63
  %112 = vmatprep.subr.mxu0 0.0
  %113 = vmatpush1.xpose.msra.mxu0 %v60
  %114 = vmatprep.subr.mxu0 0.0
  %115 = vmatpush1.xpose.msra.mxu0 %v57
  %116 = vmatprep.subr.mxu0 0.0
  %117 = vmatpush1.xpose.msra.mxu0 %v54
  %118 = vmatprep.subr.mxu0 0.0
  %119 = vmatpush1.xpose.msra.mxu0 %v51
  %120 = vmatprep.subr.mxu0 0.0
  %121 = vmatpush1.xpose.msra.mxu0 %v48
  %122 = vmatprep.subr.mxu0 0.0
  %123 = vmatpush1.xpose.msra.mxu0 %v45
  %124 = vmatprep.subr.mxu0 0.0
  %125 = vmatpush2.xpose.msra.mxu0 0.0
  %126 = vmatprep.subr.mxu0 0.0
  %127 = vmatpush2.xpose.msra.mxu0 0.0
  %128 = vmatprep.subr.mxu0 0.0
  %129 = vmatpush2.xpose.msra.mxu0 0.0
  %130 = vmatprep.subr.mxu0 0.0
  %131 = vmatpush2.xpose.msra.mxu0 0.0
  %132 = vmatprep.subr.mxu0 0.0
  %133 = vmatpush2.xpose.msra.mxu0 0.0
  %134 = vmatprep.subr.mxu0 0.0
  %135 = vmatpush2.xpose.msra.mxu0 0.0
  %136 = vmatprep.subr.mxu0 0.0
  %137 = vmatpush2.xpose.msra.mxu0 0.0
  %138 = vmatprep.subr.mxu0 0.0
  %139 = vmatpush2.xpose.msra.mxu0 0.0
  %140 = vmatprep.subr.mxu0 0.0
  %141 = vmatpush2.xpose.msra.mxu0 0.0
  %142 = vmatprep.subr.mxu0 0.0
  %143 = vmatpush2.xpose.msra.mxu0 0.0
  %144 = vmatprep.subr.mxu0 0.0
  %145 = vmatpush2.xpose.msra.mxu0 0.0
  %146 = vmatprep.subr.mxu0 0.0
  %147 = vmatpush2.xpose.msra.mxu0 0.0
  %148 = vmatprep.subr.mxu0 0.0
  %149 = vmatpush2.xpose.msra.mxu0 0.0
  %150 = vmatprep.subr.mxu0 0.0
  %151 = vmatpush2.xpose.msra.mxu0 0.0
  %152 = vmatprep.subr.mxu0 0.0
  %153 = vmatpush2.xpose.msra.mxu0 0.0
  %154 = vmatprep.subr.mxu0 0.0
  %155 = vmatpush2.xpose.msra.mxu0 0.0
  %156 = vmatprep.mubr.f32.mxu0 0.0
  %157 = vmatmul.mubr.f32.gmra.mxu0 %v42
  %v158 = vpop.f32.mrf.mxu0
  %v159 = vadd.f32 %v38, %v158
  %v160 = vpop.f32.mrf.mxu0
  %161 = vdwg.mxu0
  %v162 = vtanh.pop %v159
  %v163 = vld [vmem:[%s2] sm:$0xff]
  %s164 = scalar_lea.vmem %s3, 8
  %v165 = vld [vmem:[%s164] sm:$0xff]
  %167 = vset.pattern.permute.xlu0 0
  %168 = vperm.xlu0 %167, %v165
  %v169 = vpop.permute.xlu0 %168
  %vm171 = vcmask 64512
  %v173 = vsel %vm171, %v163, 0
  %175 = vmatprep.subr.mxu0 0.0
  %176 = vmatpush1.msra.mxu0 0.0
  %177 = vmatprep.subr.mxu0 0.0
  %178 = vmatpush1.msra.mxu0 0.0
  %179 = vmatprep.subr.mxu0 0.0
  %180 = vmatpush1.msra.mxu0 0.0
  %181 = vmatprep.subr.mxu0 0.0
  %182 = vmatpush1.msra.mxu0 0.0
  %183 = vmatprep.subr.mxu0 0.0
  %184 = vmatpush1.msra.mxu0 0.0
  %185 = vmatprep.subr.mxu0 0.0
  %186 = vmatpush1.msra.mxu0 0.0
  %187 = vmatprep.subr.mxu0 0.0
  %188 = vmatpush1.msra.mxu0 0.0
  %189 = vmatprep.subr.mxu0 0.0
  %190 = vmatpush1.msra.mxu0 0.0
  %191 = vmatprep.subr.mxu0 0.0
  %192 = vmatpush1.msra.mxu0 0.0
  %193 = vmatprep.subr.mxu0 0.0
  %194 = vmatpush1.msra.mxu0 0.0
  %195 = vmatprep.subr.mxu0 0.0
  %196 = vmatpush1.msra.mxu0 0.0
  %197 = vmatprep.subr.mxu0 0.0
  %198 = vmatpush1.msra.mxu0 0.0
  %199 = vmatprep.subr.mxu0 0.0
  %200 = vmatpush1.msra.mxu0 0.0
  %201 = vmatprep.subr.mxu0 0.0
  %202 = vmatpush1.msra.mxu0 0.0
  %203 = vmatprep.subr.mxu0 0.0
  %204 = vmatpush1.msra.mxu0 0.0
  %205 = vmatprep.subr.mxu0 0.0
  %206 = vmatpush1.msra.mxu0 %v162
  %207 = vmatprep.subr.mxu0 0.0
  %208 = vmatpush2.msra.mxu0 0.0
  %209 = vmatprep.subr.mxu0 0.0
  %210 = vmatpush2.msra.mxu0 0.0
  %211 = vmatprep.subr.mxu0 0.0
  %212 = vmatpush2.msra.mxu0 0.0
  %213 = vmatprep.subr.mxu0 0.0
  %214 = vmatpush2.msra.mxu0 0.0
  %215 = vmatprep.subr.mxu0 0.0
  %216 = vmatpush2.msra.mxu0 0.0
  %217 = vmatprep.subr.mxu0 0.0
  %218 = vmatpush2.msra.mxu0 0.0
  %219 = vmatprep.subr.mxu0 0.0
  %220 = vmatpush2.msra.mxu0 0.0
  %221 = vmatprep.subr.mxu0 0.0
  %222 = vmatpush2.msra.mxu0 0.0
  %223 = vmatprep.subr.mxu0 0.0
  %224 = vmatpush2.msra.mxu0 0.0
  %225 = vmatprep.subr.mxu0 0.0
  %226 = vmatpush2.msra.mxu0 0.0
  %227 = vmatprep.subr.mxu0 0.0
  %228 = vmatpush2.msra.mxu0 0.0
  %229 = vmatprep.subr.mxu0 0.0
  %230 = vmatpush2.msra.mxu0 0.0
  %231 = vmatprep.subr.mxu0 0.0
  %232 = vmatpush2.msra.mxu0 0.0
  %233 = vmatprep.subr.mxu0 0.0
  %234 = vmatpush2.msra.mxu0 0.0
  %235 = vmatprep.subr.mxu0 0.0
  %236 = vmatpush2.msra.mxu0 0.0
  %237 = vmatprep.subr.mxu0 0.0
  %238 = vmatpush2.msra.mxu0 0.0
  %239 = vmatprep.mubr.f32.mxu0 0.0
  %240 = vmatmul.mubr.f32.gmra.mxu0 %v173
  %v241 = vpop.f32.mrf.mxu0
  %v242 = vadd.f32 %v169, %v241
  %v243 = vpop.f32.mrf.mxu0
  %244 = vdwg.mxu0
  %v245 = vtanh.pop %v242
  %s246 = scalar_lea.vmem %s2, 8
  %v247 = vld [vmem:[%s246] sm:$0xff]
  %s248 = scalar_lea.vmem %s3, 16
  %v249 = vld [vmem:[%s248] sm:$0xff]
  %251 = vset.pattern.permute.xlu0 0
  %252 = vperm.xlu0 %251, %v249
  %v253 = vpop.permute.xlu0 %252
  %v256 = vsel %vm171, %v247, 0
  %258 = vmatprep.subr.mxu0 0.0
  %259 = vmatpush1.msra.mxu0 0.0
  %260 = vmatprep.subr.mxu0 0.0
  %261 = vmatpush1.msra.mxu0 0.0
  %262 = vmatprep.subr.mxu0 0.0
  %263 = vmatpush1.msra.mxu0 0.0
  %264 = vmatprep.subr.mxu0 0.0
  %265 = vmatpush1.msra.mxu0 0.0
  %266 = vmatprep.subr.mxu0 0.0
  %267 = vmatpush1.msra.mxu0 0.0
  %268 = vmatprep.subr.mxu0 0.0
  %269 = vmatpush1.msra.mxu0 0.0
  %270 = vmatprep.subr.mxu0 0.0
  %271 = vmatpush1.msra.mxu0 0.0
  %272 = vmatprep.subr.mxu0 0.0
  %273 = vmatpush1.msra.mxu0 0.0
  %274 = vmatprep.subr.mxu0 0.0
  %275 = vmatpush1.msra.mxu0 0.0
  %276 = vmatprep.subr.mxu0 0.0
  %277 = vmatpush1.msra.mxu0 0.0
  %278 = vmatprep.subr.mxu0 0.0
  %279 = vmatpush1.msra.mxu0 0.0
  %280 = vmatprep.subr.mxu0 0.0
  %281 = vmatpush1.msra.mxu0 0.0
  %282 = vmatprep.subr.mxu0 0.0
  %283 = vmatpush1.msra.mxu0 0.0
  %284 = vmatprep.subr.mxu0 0.0
  %285 = vmatpush1.msra.mxu0 0.0
  %286 = vmatprep.subr.mxu0 0.0
  %287 = vmatpush1.msra.mxu0 0.0
  %288 = vmatprep.subr.mxu0 0.0
  %289 = vmatpush1.msra.mxu0 %v245
  %290 = vmatprep.subr.mxu0 0.0
  %291 = vmatpush2.msra.mxu0 0.0
  %292 = vmatprep.subr.mxu0 0.0
  %293 = vmatpush2.msra.mxu0 0.0
  %294 = vmatprep.subr.mxu0 0.0
  %295 = vmatpush2.msra.mxu0 0.0
  %296 = vmatprep.subr.mxu0 0.0
  %297 = vmatpush2.msra.mxu0 0.0
  %298 = vmatprep.subr.mxu0 0.0
  %299 = vmatpush2.msra.mxu0 0.0
  %300 = vmatprep.subr.mxu0 0.0
  %301 = vmatpush2.msra.mxu0 0.0
  %302 = vmatprep.subr.mxu0 0.0
  %303 = vmatpush2.msra.mxu0 0.0
  %304 = vmatprep.subr.mxu0 0.0
  %305 = vmatpush2.msra.mxu0 0.0
  %306 = vmatprep.subr.mxu0 0.0
  %307 = vmatpush2.msra.mxu0 0.0
  %308 = vmatprep.subr.mxu0 0.0
  %309 = vmatpush2.msra.mxu0 0.0
  %310 = vmatprep.subr.mxu0 0.0
  %311 = vmatpush2.msra.mxu0 0.0
  %312 = vmatprep.subr.mxu0 0.0
  %313 = vmatpush2.msra.mxu0 0.0
  %314 = vmatprep.subr.mxu0 0.0
  %315 = vmatpush2.msra.mxu0 0.0
  %316 = vmatprep.subr.mxu0 0.0
  %317 = vmatpush2.msra.mxu0 0.0
  %318 = vmatprep.subr.mxu0 0.0
  %319 = vmatpush2.msra.mxu0 0.0
  %320 = vmatprep.subr.mxu0 0.0
  %321 = vmatpush2.msra.mxu0 0.0
  %322 = vmatprep.mubr.f32.mxu0 0.0
  %323 = vmatmul.mubr.f32.gmra.mxu0 %v256
  %v324 = vpop.f32.mrf.mxu0
  %v325 = vadd.f32 %v253, %v324
  %v326 = vpop.f32.mrf.mxu0
  %327 = vdwg.mxu0
  %v328 = vtanh.pop %v325
  %s329 = scalar_lea.vmem %s2, 16
  %v330 = vld [vmem:[%s329] sm:$0xff]
  %s331 = scalar_lea.vmem %s3, 24
  %v332 = vld [vmem:[%s331] sm:$0xff]
  %334 = vset.pattern.permute.xlu0 0
  %335 = vperm.xlu0 %334, %v332
  %v336 = vpop.permute.xlu0 %335
  %v339 = vsel %vm171, %v330, 0
  %341 = vmatprep.subr.mxu0 0.0
  %342 = vmatpush1.msra.mxu0 0.0
  %343 = vmatprep.subr.mxu0 0.0
  %344 = vmatpush1.msra.mxu0 0.0
  %345 = vmatprep.subr.mxu0 0.0
  %346 = vmatpush1.msra.mxu0 0.0
  %347 = vmatprep.subr.mxu0 0.0
  %348 = vmatpush1.msra.mxu0 0.0
  %349 = vmatprep.subr.mxu0 0.0
  %350 = vmatpush1.msra.mxu0 0.0
  %351 = vmatprep.subr.mxu0 0.0
  %352 = vmatpush1.msra.mxu0 0.0
  %353 = vmatprep.subr.mxu0 0.0
  %354 = vmatpush1.msra.mxu0 0.0
  %355 = vmatprep.subr.mxu0 0.0
  %356 = vmatpush1.msra.mxu0 0.0
  %357 = vmatprep.subr.mxu0 0.0
  %358 = vmatpush1.msra.mxu0 0.0
  %359 = vmatprep.subr.mxu0 0.0
  %360 = vmatpush1.msra.mxu0 0.0
  %361 = vmatprep.subr.mxu0 0.0
  %362 = vmatpush1.msra.mxu0 0.0
  %363 = vmatprep.subr.mxu0 0.0
  %364 = vmatpush1.msra.mxu0 0.0
  %365 = vmatprep.subr.mxu0 0.0
  %366 = vmatpush1.msra.mxu0 0.0
  %367 = vmatprep.subr.mxu0 0.0
  %368 = vmatpush1.msra.mxu0 0.0
  %369 = vmatprep.subr.mxu0 0.0
  %370 = vmatpush1.msra.mxu0 0.0
  %371 = vmatprep.subr.mxu0 0.0
  %372 = vmatpush1.msra.mxu0 %v328
  %373 = vmatprep.subr.mxu0 0.0
  %374 = vmatpush2.msra.mxu0 0.0
  %375 = vmatprep.subr.mxu0 0.0
  %376 = vmatpush2.msra.mxu0 0.0
  %377 = vmatprep.subr.mxu0 0.0
  %378 = vmatpush2.msra.mxu0 0.0
  %379 = vmatprep.subr.mxu0 0.0
  %380 = vmatpush2.msra.mxu0 0.0
  %381 = vmatprep.subr.mxu0 0.0
  %382 = vmatpush2.msra.mxu0 0.0
  %383 = vmatprep.subr.mxu0 0.0
  %384 = vmatpush2.msra.mxu0 0.0
  %385 = vmatprep.subr.mxu0 0.0
  %386 = vmatpush2.msra.mxu0 0.0
  %387 = vmatprep.subr.mxu0 0.0
  %388 = vmatpush2.msra.mxu0 0.0
  %389 = vmatprep.subr.mxu0 0.0
  %390 = vmatpush2.msra.mxu0 0.0
  %391 = vmatprep.subr.mxu0 0.0
  %392 = vmatpush2.msra.mxu0 0.0
  %393 = vmatprep.subr.mxu0 0.0
  %394 = vmatpush2.msra.mxu0 0.0
  %395 = vmatprep.subr.mxu0 0.0
  %396 = vmatpush2.msra.mxu0 0.0
  %397 = vmatprep.subr.mxu0 0.0
  %398 = vmatpush2.msra.mxu0 0.0
  %399 = vmatprep.subr.mxu0 0.0
  %400 = vmatpush2.msra.mxu0 0.0
  %401 = vmatprep.subr.mxu0 0.0
  %402 = vmatpush2.msra.mxu0 0.0
  %403 = vmatprep.subr.mxu0 0.0
  %404 = vmatpush2.msra.mxu0 0.0
  %405 = vmatprep.mubr.f32.mxu0 0.0
  %406 = vmatmul.mubr.f32.gmra.mxu0 %v339
  %v407 = vpop.f32.mrf.mxu0
  %v408 = vadd.f32 %v336, %v407
  %v409 = vpop.f32.mrf.mxu0
  %410 = vdwg.mxu0
  %v411 = vtanh.pop %v408
  %s412 = scalar_lea.vmem %s2, 24
  %v413 = vld [vmem:[%s412] sm:$0xff]
  %v415 = vsel %vm171, %v413, 0
  %417 = vmatprep.subr.mxu0 0.0
  %418 = vmatpush1.msra.mxu0 0.0
  %419 = vmatprep.subr.mxu0 0.0
  %420 = vmatpush1.msra.mxu0 0.0
  %421 = vmatprep.subr.mxu0 0.0
  %422 = vmatpush1.msra.mxu0 0.0
  %423 = vmatprep.subr.mxu0 0.0
  %424 = vmatpush1.msra.mxu0 0.0
  %425 = vmatprep.subr.mxu0 0.0
  %426 = vmatpush1.msra.mxu0 0.0
  %427 = vmatprep.subr.mxu0 0.0
  %428 = vmatpush1.msra.mxu0 0.0
  %429 = vmatprep.subr.mxu0 0.0
  %430 = vmatpush1.msra.mxu0 0.0
  %431 = vmatprep.subr.mxu0 0.0
  %432 = vmatpush1.msra.mxu0 0.0
  %433 = vmatprep.subr.mxu0 0.0
  %434 = vmatpush1.msra.mxu0 0.0
  %435 = vmatprep.subr.mxu0 0.0
  %436 = vmatpush1.msra.mxu0 0.0
  %437 = vmatprep.subr.mxu0 0.0
  %438 = vmatpush1.msra.mxu0 0.0
  %439 = vmatprep.subr.mxu0 0.0
  %440 = vmatpush1.msra.mxu0 0.0
  %441 = vmatprep.subr.mxu0 0.0
  %442 = vmatpush1.msra.mxu0 0.0
  %443 = vmatprep.subr.mxu0 0.0
  %444 = vmatpush1.msra.mxu0 0.0
  %445 = vmatprep.subr.mxu0 0.0
  %446 = vmatpush1.msra.mxu0 0.0
  %447 = vmatprep.subr.mxu0 0.0
  %448 = vmatpush1.msra.mxu0 %v411
  %449 = vmatprep.subr.mxu0 0.0
  %450 = vmatpush2.msra.mxu0 0.0
  %451 = vmatprep.subr.mxu0 0.0
  %452 = vmatpush2.msra.mxu0 0.0
  %453 = vmatprep.subr.mxu0 0.0
  %454 = vmatpush2.msra.mxu0 0.0
  %455 = vmatprep.subr.mxu0 0.0
  %456 = vmatpush2.msra.mxu0 0.0
  %457 = vmatprep.subr.mxu0 0.0
  %458 = vmatpush2.msra.mxu0 0.0
  %459 = vmatprep.subr.mxu0 0.0
  %460 = vmatpush2.msra.mxu0 0.0
  %461 = vmatprep.subr.mxu0 0.0
  %462 = vmatpush2.msra.mxu0 0.0
  %463 = vmatprep.subr.mxu0 0.0
  %464 = vmatpush2.msra.mxu0 0.0
  %465 = vmatprep.subr.mxu0 0.0
  %466 = vmatpush2.msra.mxu0 0.0
  %467 = vmatprep.subr.mxu0 0.0
  %468 = vmatpush2.msra.mxu0 0.0
  %469 = vmatprep.subr.mxu0 0.0
  %470 = vmatpush2.msra.mxu0 0.0
  %471 = vmatprep.subr.mxu0 0.0
  %472 = vmatpush2.msra.mxu0 0.0
  %473 = vmatprep.subr.mxu0 0.0
  %474 = vmatpush2.msra.mxu0 0.0
  %475 = vmatprep.subr.mxu0 0.0
  %476 = vmatpush2.msra.mxu0 0.0
  %477 = vmatprep.subr.mxu0 0.0
  %478 = vmatpush2.msra.mxu0 0.0
  %479 = vmatprep.subr.mxu0 0.0
  %480 = vmatpush2.msra.mxu0 0.0
  %481 = vmatprep.mubr.f32.mxu0 0.0
  %482 = vmatmul.mubr.f32.gmra.mxu0 %v415
  %v483 = vpop.f32.mrf.mxu0
  %v484 = vadd.f32 0.0, %v483
  %v485 = vpop.f32.mrf.mxu0
  %486 = vdwg.mxu0
  %s487 = scalar_lea.vmem %s3, 32
  %v488 = vld [vmem:[%s487] sm:$0xff]
  %490 = vset.pattern.permute.xlu0 0
  %491 = vperm.xlu0 %490, %v488
  %v492 = vpop.permute.xlu0 %491
  %v494 = vadd.f32 %v484, %v492
  %495 = vst [vmem:[%s4] sm:$0x1] %v494
  // Predicated region
  $region18: #{_ffnn_forward.1} parent=0 // pred_check
    _
  $region19: #{_ffnn_forward.1} parent=0 // pred_check_branch
    %497 = sbr.rel (0) target = $region21
  $region20: #{_ffnn_forward.1} parent=0 // pred_region
    _
  $region21: #{_ffnn_forward.1} parent=0 // pred_fallthru
    _
  // Predicated region
  $region22: #{_ffnn_forward.1} parent=0 // pred_check
    _
  $region23: #{_ffnn_forward.1} parent=0 // pred_check_branch
    %499 = sbr.rel (0) target = $region25
  $region24: #{_ffnn_forward.1} parent=0 // pred_region
    _
  $region25: #{_ffnn_forward.1} parent=0 // pred_fallthru
    _

</llo_original>
